<compile_context>
chip_gen: v5e
topology: v5e:2x2
jax: 0.10.0
libtpu: 0.0.40
codegen_flags: <defaults>
</compile_context>

<pallas_src>
from functools import partial

import numpy as np
import jax
import jax.numpy as jnp
from jax.experimental import pallas as pl
from jax.experimental.pallas import tpu as pltpu


# ----------------------------------------------------------------------------
# Filterbank construction (deterministic, numpy; mirrors padertorch get_fbanks)
# ----------------------------------------------------------------------------
def _hz2mel(f):
    return 2595.0 * np.log10(1.0 + np.asarray(f, dtype=np.float64) / 700.0)


def _mel2hz(m):
    return 700.0 * (10.0 ** (np.asarray(m, dtype=np.float64) / 2595.0) - 1.0)


def get_fbanks(n_mels, fft_length, sample_rate, fmin=50.0, fmax=None):
    """Triangular mel filterbank, shape (n_mels, fft_length//2 + 1)."""
    fmin = 0.0 if fmin is None else float(fmin)
    fmax = sample_rate / 2.0 if fmax is None else float(fmax)
    n_freqs = fft_length // 2 + 1

    corners_hz = _mel2hz(np.linspace(_hz2mel(fmin), _hz2mel(fmax), n_mels + 2))
    freqs = np.linspace(0.0, sample_rate / 2.0, n_freqs)

    fbanks = np.zeros((n_mels, n_freqs), dtype=np.float64)
    for i in range(n_mels):
        lo, ce, hi = corners_hz[i], corners_hz[i + 1], corners_hz[i + 2]
        rising = (freqs - lo) / max(ce - lo, 1e-12)
        falling = (hi - freqs) / max(hi - ce, 1e-12)
        fbanks[i] = np.maximum(0.0, np.minimum(rising, falling))
    return fbanks.astype(np.float32)


def _round_up(n, m):
    return ((n + m - 1) // m) * m


# ----------------------------------------------------------------------------
# Pallas kernel: fused matmul (tm, F) @ (F, n_mels) + log(. + eps)
# ----------------------------------------------------------------------------
def _mel_kernel(x_ref, fb_ref, o_ref, *, eps, log):
    y = jnp.dot(x_ref[...], fb_ref[...], preferred_element_type=jnp.float32)
    if log:
        y = jnp.log(y + eps)
    o_ref[...] = y.astype(o_ref.dtype)


class MelTransform:
    """JAX/Pallas port of padertorch MelTransform (inference forward path)."""

    def __init__(self, n_mels, sample_rate, fft_length,
                 fmin=50.0, fmax=None, log=True, eps=1e-12,
                 compute_dtype=jnp.float32, tile_m=4096):
        # TODO(synk): training-time `warping_fn` filterbank re-warping is
        # host-side numpy in the original module and is not implemented here.
        self.n_mels = n_mels
        self.sample_rate = sample_rate
        self.fft_length = fft_length
        self.fmin = fmin
        self.fmax = fmax
        self.log = log
        self.eps = eps
        self.compute_dtype = jnp.dtype(compute_dtype)
        self.tile_m = int(tile_m)

        F = fft_length // 2 + 1
        fbanks = get_fbanks(
            n_mels=n_mels, fft_length=fft_length,
            sample_rate=sample_rate, fmin=fmin, fmax=fmax,
        ).astype(np.float32)
        fbanks = fbanks / (fbanks.sum(axis=-1, keepdims=True) + 1e-6)
        # Stored transposed: (F, n_mels), matching nn.Parameter(fbanks.T).
        # ReLU is a no-op (filters nonnegative); applied for exact fidelity.
        fb_t = np.maximum(fbanks.T, 0.0).astype(np.float32)         # (F, n_mels)
        self._fbanks = jnp.asarray(fb_t, dtype=jnp.float32)         # reference
        self._fbanks_kernel = jnp.asarray(fb_t, dtype=self.compute_dtype)

    def __call__(self, x, tile_m=None):
        """x: (..., F) with F = fft_length//2 + 1.  Returns (..., n_mels)."""
        F = self.fft_length // 2 + 1
        assert x.shape[-1] == F, (x.shape, F)
        tm = self.tile_m if tile_m is None else int(tile_m)

        lead_shape = x.shape[:-1]
        M = int(np.prod(lead_shape)) if lead_shape else 1
        x2d = x.reshape(M, F)
        if x2d.dtype != self.compute_dtype:
            # Only pays off if the conversion fuses into x's producer or x is
            # already in compute_dtype; default compute_dtype=f32 keeps this a
            # no-op for f32 inputs.
            x2d = x2d.astype(self.compute_dtype)

        # Row tiling: no wrapper-side jnp.pad.  Either a single full-extent
        # block (legal for any M), or tm rows (multiple of 8) with Pallas
        # masking the partial last block.
        if M <= tm:
            tm_eff, grid = M, 1
        else:
            tm_eff = _round_up(min(tm, M), 8)
            grid = pl.cdiv(M, tm_eff)

        nm = self.n_mels
        in_itemsize = self.compute_dtype.itemsize
        # Double-buffered x tile + double-buffered out tile + resident fbanks,
        # plus headroom for matmul intermediates / internal scratch.
        vmem_limit = int(
            2 * tm_eff * F * in_itemsize
            + 2 * tm_eff * nm * 4
            + 2 * F * nm * in_itemsize
            + (8 << 20)
        )

        out = pl.pallas_call(
            partial(_mel_kernel, eps=self.eps, log=self.log),
            out_shape=jax.ShapeDtypeStruct((M, nm), jnp.float32),
            grid_spec=pltpu.PrefetchScalarGridSpec(
                num_scalar_prefetch=0,
                grid=(grid,),
                in_specs=[
                    # x tile: (tm_eff, F); F equals the full last dim.
                    pl.BlockSpec((tm_eff, F), lambda i: (i, 0)),
                    # fbanks: whole (F, n_mels) matrix; same block index each
                    # step, so Pallas keeps it resident (DMA'd once).
                    pl.BlockSpec((F, nm), lambda i: (0, 0)),
                ],
                # Output at n_mels width directly: n_mels equals the full last
                # dim, so the BlockSpec is legal; the small masked stores are
                # hidden under the matmul / x DMA and we avoid an extra
                # wrapper-side slice pass over HBM.
                out_specs=pl.BlockSpec((tm_eff, nm), lambda i: (i, 0)),
            ),
            compiler_params=pltpu.CompilerParams(
                dimension_semantics=("parallel",),   # megacore-shardable axis
                vmem_limit_bytes=vmem_limit,
            ),
        )(x2d, self._fbanks_kernel)

        return out.reshape(*lead_shape, self.n_mels)


# ----------------------------------------------------------------------------
# Pure-JAX reference for verification
# ----------------------------------------------------------------------------
def mel_reference(x, fbanks_t, eps, log):
    y = jnp.matmul(x.astype(jnp.float32), fbanks_t)
    if log:
        y = jnp.log(y + eps)
    return y


if __name__ == "__main__":
    n_mels = 40
    sample_rate = 16000
    fft_length = 512
    F = fft_length // 2 + 1  # 257

    key = jax.random.PRNGKey(0)
    k1, k2 = jax.random.split(key)

    mel = MelTransform(n_mels=n_mels, sample_rate=sample_rate,
                       fft_length=fft_length)

    # Case 1: small module-consistent shapes (B, C, T, F); single block.
    B, C, T = 2, 1, 16
    x = jax.random.uniform(k1, (B, C, T, F), dtype=jnp.float32) ** 2
    out = jax.block_until_ready(mel(x))
    assert out.shape == (B, C, T, n_mels), out.shape
    ref = mel_reference(x, mel._fbanks, mel.eps, mel.log)
    np.testing.assert_allclose(np.asarray(out), np.asarray(ref),
                               rtol=1e-4, atol=1e-4)

    # Case 2: multi-step grid with a partial last block (M=30, tile_m=16)
    # to exercise the masked-remainder path (no wrapper padding involved).
    x2 = jax.random.uniform(k2, (3, 1, 10, F), dtype=jnp.float32) ** 2
    out2 = jax.block_until_ready(mel(x2, tile_m=16))
    assert out2.shape == (3, 1, 10, n_mels), out2.shape
    ref2 = mel_reference(x2, mel._fbanks, mel.eps, mel.log)
    np.testing.assert_allclose(np.asarray(out2), np.asarray(ref2),
                               rtol=1e-4, atol=1e-4)

    print("KERNEL_OK")
</pallas_src>

<mosaic_0001>
module attributes {stable_mosaic.version = 11 : i64} {
  func.func @_mel_kernel(%arg0: i32, %arg1: memref<32x257xf32, #tpu.memory_space<vmem>>, %arg2: memref<257x40xf32, #tpu.memory_space<vmem>>, %arg3: memref<32x40xf32, #tpu.memory_space<vmem>>) attributes {dimension_semantics = [#tpu.dimension_semantics<parallel>], iteration_bounds = array<i64: 1>, scalar_prefetch = 0 : i64, scratch_operands = 0 : i64, tpu.core_type = #tpu.core_type<tc>, window_params = [{transform_indices = @transform_0, window_bounds = array<i64: 32, 257>}, {pipeline_mode = #tpu.pipeline_mode<synchronous>, transform_indices = @transform_1, window_bounds = array<i64: 257, 40>}, {transform_indices = @transform_2, window_bounds = array<i64: 32, 40>}]} {
    %c0 = arith.constant 0 : index
    %c0_0 = arith.constant 0 : index
    %0 = vector.load %arg1[%c0, %c0_0] : memref<32x257xf32, #tpu.memory_space<vmem>>, vector<32x257xf32>
    %c0_1 = arith.constant 0 : index
    %c0_2 = arith.constant 0 : index
    %1 = vector.load %arg2[%c0_1, %c0_2] : memref<257x40xf32, #tpu.memory_space<vmem>>, vector<257x40xf32>
    %cst = arith.constant dense<0.000000e+00> : vector<32x40xf32>
    %2 = tpu.matmul %0, %1, %cst {dimension_numbers = #tpu.dot_dimension_numbers<[1], [0], [0], [1], [0, 0, 1, 1], [], []>} : vector<32x257xf32>, vector<257x40xf32>, vector<32x40xf32> -> vector<32x40xf32>
    %cst_3 = arith.constant 9.99999996E-13 : f32
    %3 = vector.broadcast %cst_3 : f32 to vector<32x40xf32>
    %4 = arith.addf %2, %3 : vector<32x40xf32>
    %5 = math.log %4 : vector<32x40xf32>
    %c0_4 = arith.constant 0 : index
    %c0_5 = arith.constant 0 : index
    %6 = vector.load %arg3[%c0_4, %c0_5] : memref<32x40xf32, #tpu.memory_space<vmem>>, vector<32x40xf32>
    tpu.vector_store %arg3[%c0_4, %c0_5], %5 {strides = array<i32>} : memref<32x40xf32, #tpu.memory_space<vmem>>, vector<32x40xf32>,
    return
  }
  func.func @transform_0(%arg0: i32) -> (i32, i32) {
    %c0_i32 = arith.constant 0 : i32
    %c0_i32_0 = arith.constant 0 : i32
    return %arg0, %c0_i32 : i32, i32
  }
  func.func @transform_1(%arg0: i32) -> (i32, i32) {
    %c0_i32 = arith.constant 0 : i32
    %c0_i32_0 = arith.constant 0 : i32
    %c0_i32_1 = arith.constant 0 : i32
    return %c0_i32, %c0_i32_0 : i32, i32
  }
  func.func @transform_2(%arg0: i32) -> (i32, i32) {
    %c0_i32 = arith.constant 0 : i32
    %c0_i32_0 = arith.constant 0 : i32
    return %arg0, %c0_i32 : i32, i32
  }
}

</mosaic_0001>

<llo_original>
// kernel: tpu_custom_call.1
$region0: #{tpu_custom_call.1}
  #allocation0 [shape = 'u32[]', space=smem, size = 0x4, offset = 0x4, fixed_abs, tag = 'smem constant byte address 0x4 - core index']
  #allocation1 [shape = 'u32[72,128]{1,0:T(1,128)}', space=vmem, size = 0x9000, scoped, tag = 'internal scratch']
  %s0 = inlined_call_operand.vmem [shape: f32[32,257], index: 0, kind: input, shape index: {}]
  %s1 = inlined_call_operand.vmem [shape: f32[257,40], index: 1, kind: input, shape index: {}]
  %s2 = inlined_call_operand.hbm [shape: f32[32,40], index: 2, kind: output, shape index: {}]
  %s3 = sld [smem:[#allocation0]]
  $region18: #{tpu_custom_call.1} parent=0
    _
  %s5 = ssub.s32 1, %s3
  %s6 = scalar_select 0, %s5, %s3
  $region1: #{tpu_custom_call.1} parent=0
    #allocation2 [shape = 'u8[16384]{0}', space=vmem, size = 0x4000, scoped, tag = 'output window, operand 0, single buffered']
    #allocation3 [shape = 's32[1]{0}', space=sflag, size = 0x4, scoped, tag = 'scoped memory for tpu_custom_call.1']
    %7 = vsyncpa [#allocation3], 0
    // Predicated region
    $region2: #{tpu_custom_call.1} parent=1 // pred_check
      _
    $region3: #{tpu_custom_call.1} parent=1 // pred_check_branch
      %9 = sbr.rel (0) target = $region5
    $region4: #{tpu_custom_call.1} parent=1 // pred_region
      _
    $region5: #{tpu_custom_call.1} parent=1 // pred_fallthru
      _
    // Predicated region
    $region6: #{tpu_custom_call.1} parent=1 // pred_check
      _
    $region7: #{tpu_custom_call.1} parent=1 // pred_check_branch
      %11 = sbr.rel (0) target = $region9
    $region8: #{tpu_custom_call.1} parent=1 // pred_region
      _
    $region9: #{tpu_custom_call.1} parent=1 // pred_fallthru
      _
    %v12 = vld [vmem:[%s0] sm:$0xff]
    %v13 = vld [vmem:[%s0 + $0x8] sm:$0xff]
    %v14 = vld [vmem:[%s0 + $0x10] sm:$0xff]
    %v15 = vld [vmem:[%s0 + $0x18] sm:$0xff]
    %v16 = vld [vmem:[%s0 + $0x20] sm:$0xff]
    %v17 = vld [vmem:[%s0 + $0x28] sm:$0xff]
    %v18 = vld [vmem:[%s0 + $0x30] sm:$0xff]
    %v19 = vld [vmem:[%s0 + $0x38] sm:$0xff]
    %v20 = vld [vmem:[%s0 + $0x40] sm:$0xff]
    %v21 = vld [vmem:[%s0 + $0x48] sm:$0xff]
    %v22 = vld [vmem:[%s0 + $0x50] sm:$0xff]
    %v23 = vld [vmem:[%s0 + $0x58] sm:$0xff]
    %v24 = vld [vmem:[%s1] sm:$0xff]
    %v25 = vld [vmem:[%s1 + $0x8] sm:$0xff]
    %v26 = vld [vmem:[%s1 + $0x10] sm:$0xff]
    %v27 = vld [vmem:[%s1 + $0x18] sm:$0xff]
    %v28 = vld [vmem:[%s1 + $0x20] sm:$0xff]
    %v29 = vld [vmem:[%s1 + $0x28] sm:$0xff]
    %v30 = vld [vmem:[%s1 + $0x30] sm:$0xff]
    %v31 = vld [vmem:[%s1 + $0x38] sm:$0xff]
    %v32 = vld [vmem:[%s1 + $0x40] sm:$0xff]
    %v33 = vld [vmem:[%s1 + $0x48] sm:$0xff]
    %v34 = vld [vmem:[%s1 + $0x50] sm:$0xff]
    %v35 = vld [vmem:[%s1 + $0x58] sm:$0xff]
    %v36 = vld [vmem:[%s1 + $0x60] sm:$0xff]
    %v37 = vld [vmem:[%s1 + $0x68] sm:$0xff]
    %v38 = vld [vmem:[%s1 + $0x70] sm:$0xff]
    %v39 = vld [vmem:[%s1 + $0x78] sm:$0xff]
    %v40 = vld [vmem:[%s1 + $0x80] sm:$0xff]
    %v41 = vld [vmem:[%s1 + $0x88] sm:$0xff]
    %v42 = vld [vmem:[%s1 + $0x90] sm:$0xff]
    %v43 = vld [vmem:[%s1 + $0x98] sm:$0xff]
    %v44 = vld [vmem:[%s1 + $0xa0] sm:$0xff]
    %v45 = vld [vmem:[%s1 + $0xa8] sm:$0xff]
    %v46 = vld [vmem:[%s1 + $0xb0] sm:$0xff]
    %v47 = vld [vmem:[%s1 + $0xb8] sm:$0xff]
    %v48 = vld [vmem:[%s1 + $0xc0] sm:$0xff]
    %v49 = vld [vmem:[%s1 + $0xc8] sm:$0xff]
    %v50 = vld [vmem:[%s1 + $0xd0] sm:$0xff]
    %v51 = vld [vmem:[%s1 + $0xd8] sm:$0xff]
    %v52 = vld [vmem:[%s1 + $0xe0] sm:$0xff]
    %v53 = vld [vmem:[%s1 + $0xe8] sm:$0xff]
    %v54 = vld [vmem:[%s1 + $0xf0] sm:$0xff]
    %v55 = vld [vmem:[%s1 + $0xf8] sm:$0xff]
    %v56 = vld [vmem:[%s1 + $0x100] sm:$0x1]
    %vm57 = vcmask 7168
    %v59 = vsel %vm57, %v14, 0
    %v62 = vsel %vm57, %v17, 0
    %v65 = vsel %vm57, %v20, 0
    %v68 = vsel %vm57, %v23, 0
    %vm70 = vcmask 1040384
    %v72 = vsel %vm70, %v56, 0
    %74 = vmatpush.msra.mxu0 %v39
    %75 = vmatpush.msra.mxu0 %v38
    %76 = vmatpush.msra.mxu0 %v37
    %77 = vmatpush.msra.mxu0 %v36
    %78 = vmatpush.msra.mxu0 %v35
    %79 = vmatpush.msra.mxu0 %v34
    %80 = vmatpush.msra.mxu0 %v33
    %81 = vmatpush.msra.mxu0 %v32
    %82 = vmatpush.msra.mxu0 %v31
    %83 = vmatpush.msra.mxu0 %v30
    %84 = vmatpush.msra.mxu0 %v29
    %85 = vmatpush.msra.mxu0 %v28
    %86 = vmatpush.msra.mxu0 %v27
    %87 = vmatpush.msra.mxu0 %v26
    %88 = vmatpush.msra.mxu0 %v25
    %89 = vmatpush.msra.mxu0 %v24
    %90 = vmatmul.f32.gmra.mxu0 %v12
    %v91 = vpop.f32.mrf.mxu0
    %v92 = vadd.f32 1e-12, %v91
    %93 = vmatmul.f32.gmra.mxu0 %v15
    %v94 = vpop.f32.mrf.mxu0
    %v95 = vadd.f32 1e-12, %v94
    %96 = vmatmul.f32.gmra.mxu0 %v18
    %v97 = vpop.f32.mrf.mxu0
    %v98 = vadd.f32 1e-12, %v97
    %99 = vmatmul.f32.gmra.mxu0 %v21
    %v100 = vpop.f32.mrf.mxu0
    %v101 = vadd.f32 1e-12, %v100
    %102 = vdwg.mxu0
    %103 = vmatpush.msra.mxu0 %v55
    %104 = vmatpush.msra.mxu0 %v54
    %105 = vmatpush.msra.mxu0 %v53
    %106 = vmatpush.msra.mxu0 %v52
    %107 = vmatpush.msra.mxu0 %v51
    %108 = vmatpush.msra.mxu0 %v50
    %109 = vmatpush.msra.mxu0 %v49
    %110 = vmatpush.msra.mxu0 %v48
    %111 = vmatpush.msra.mxu0 %v47
    %112 = vmatpush.msra.mxu0 %v46
    %113 = vmatpush.msra.mxu0 %v45
    %114 = vmatpush.msra.mxu0 %v44
    %115 = vmatpush.msra.mxu0 %v43
    %116 = vmatpush.msra.mxu0 %v42
    %117 = vmatpush.msra.mxu0 %v41
    %118 = vmatpush.msra.mxu0 %v40
    %119 = vmatmul.f32.gmra.mxu0 %v13
    %v120 = vpop.f32.mrf.mxu0
    %v121 = vadd.f32 %v92, %v120
    %122 = vmatmul.f32.gmra.mxu0 %v16
    %v123 = vpop.f32.mrf.mxu0
    %v124 = vadd.f32 %v95, %v123
    %125 = vmatmul.f32.gmra.mxu0 %v19
    %v126 = vpop.f32.mrf.mxu0
    %v127 = vadd.f32 %v98, %v126
    %128 = vmatmul.f32.gmra.mxu0 %v22
    %v129 = vpop.f32.mrf.mxu0
    %v130 = vadd.f32 %v101, %v129
    %131 = vdwg.mxu0
    %132 = vmatpush.msra.mxu0 0.0
    %133 = vmatpush.msra.mxu0 0.0
    %134 = vmatpush.msra.mxu0 0.0
    %135 = vmatpush.msra.mxu0 0.0
    %136 = vmatpush.msra.mxu0 0.0
    %137 = vmatpush.msra.mxu0 0.0
    %138 = vmatpush.msra.mxu0 0.0
    %139 = vmatpush.msra.mxu0 0.0
    %140 = vmatpush.msra.mxu0 0.0
    %141 = vmatpush.msra.mxu0 0.0
    %142 = vmatpush.msra.mxu0 0.0
    %143 = vmatpush.msra.mxu0 0.0
    %144 = vmatpush.msra.mxu0 0.0
    %145 = vmatpush.msra.mxu0 0.0
    %146 = vmatpush.msra.mxu0 0.0
    %147 = vmatpush.msra.mxu0 %v72
    %148 = vmatmul.f32.gmra.mxu0 %v59
    %v149 = vpop.f32.mrf.mxu0
    %v150 = vadd.f32 %v121, %v149
    %151 = vmatmul.f32.gmra.mxu0 %v62
    %v152 = vpop.f32.mrf.mxu0
    %v153 = vadd.f32 %v124, %v152
    %154 = vmatmul.f32.gmra.mxu0 %v65
    %v155 = vpop.f32.mrf.mxu0
    %v156 = vadd.f32 %v127, %v155
    %157 = vmatmul.f32.gmra.mxu0 %v68
    %v158 = vpop.f32.mrf.mxu0
    %v159 = vadd.f32 %v130, %v158
    %160 = vdwg.mxu0
    %v161 = vlog2.pop %v150
    %v162 = vmul.f32 %v161, 0.6931472
    %v163 = vlog2.pop %v153
    %v164 = vmul.f32 %v163, 0.6931472
    %v165 = vlog2.pop %v156
    %v166 = vmul.f32 %v165, 0.6931472
    %v167 = vlog2.pop %v159
    %v168 = vmul.f32 %v167, 0.6931472
    %vm169 = vcmask 326656
    %170 = vst.msk [vmem:[#allocation2] sm:$0xff] %vm169, %v162
    %171 = vst.msk [vmem:[#allocation2 + $0x8] sm:$0xff] %vm169, %v164
    %172 = vst.msk [vmem:[#allocation2 + $0x10] sm:$0xff] %vm169, %v166
    %173 = vst.msk [vmem:[#allocation2 + $0x18] sm:$0xff] %vm169, %v168
    // Predicated region
    $region10: #{tpu_custom_call.1} parent=1 // pred_check
      _
    $region11: #{tpu_custom_call.1} parent=1 // pred_check_branch
      %175 = sbr.rel (0) target = $region13
    $region12: #{tpu_custom_call.1} parent=1 // pred_region
      %177 = vsyncadd [#allocation3], 0
      %s178 = sshll.u32 [#allocation2], 4
      %s179 = int_to_ptr.vmem [resolvable:$true] %s178
      %s180 = sshll.u32 %s2, 4
      %s181 = int_to_ptr.hbm [resolvable:$true] %s180
      %186 = dma.vmem_to_hbm [thread:$0]  %s179, 512, %s181, [#allocation3], 128, 128, 8
    $region13: #{tpu_custom_call.1} parent=1 // pred_fallthru
      _
    // Predicated region
    $region14: #{tpu_custom_call.1} parent=1 // pred_check
      _
    $region15: #{tpu_custom_call.1} parent=1 // pred_check_branch
      %188 = sbr.rel (0) target = $region17
    $region16: #{tpu_custom_call.1} parent=1 // pred_region
      %190 = dma.done [#allocation3], 512
    $region17: #{tpu_custom_call.1} parent=1 // pred_fallthru
      _
    %191 = vsyncpa [#allocation3], 1

</llo_original>
